<compile_context>
chip_gen: v6e
topology: v6e:2x2x1
jax: 0.10.0
libtpu: 0.0.40
codegen_flags: <defaults>
</compile_context>

<pallas_src>
import jax
import jax.numpy as jnp
import numpy as np
from jax.experimental import pallas as pl
from jax.experimental.pallas import tpu as pltpu

_ACTION_DIM = 3
_A_PAD = 8                           # pad 3 -> 8 lanes for the final matmul
_DEFAULT_BLOCK_B = 1024              # batch tile target (sweep 1024-2048)
_XLA_FALLBACK_MAX_B = 256            # below this a standalone Pallas call is overhead-bound
_VMEM_BUDGET_BYTES = 48 * 1024 * 1024  # safe on v7x (64 MiB physical); raisable scoped limit elsewhere

# One-shot capability flag for pipeline_mode=pl.Buffered(1) on the constant specs.
_single_buffer_weights_ok = True


# --------------------------------------------------------------------------- #
# Kernel: one batch tile of the 3-layer MLP.  Weights/biases are VMEM-resident
# (constant index_map, single-buffered); x / mean blocks stream per grid step.
# --------------------------------------------------------------------------- #
def _action_head_kernel(x_ref, w1_ref, b1_ref, w2_ref, b2_ref, w3_ref, b3_ref,
                        mean_ref):
    x = x_ref[...].astype(jnp.bfloat16)                       # no-op if producer gave bf16
    h1 = jnp.dot(x, w1_ref[...], preferred_element_type=jnp.float32) + b1_ref[...]
    h1 = jnp.maximum(h1, 0.0).astype(jnp.bfloat16)
    h2 = jnp.dot(h1, w2_ref[...], preferred_element_type=jnp.float32) + b2_ref[...]
    h2 = jnp.maximum(h2, 0.0).astype(jnp.bfloat16)
    mean_pad = (
        jnp.dot(h2, w3_ref[...], preferred_element_type=jnp.float32) + b3_ref[...]
    )                                                          # (tb, _A_PAD)
    # Masked 3-lane store straight into the (B, 3) output — no XLA post-slice.
    mean_ref[...] = mean_pad[:, :_ACTION_DIM]


# --------------------------------------------------------------------------- #
# Parameter preparation (run ONCE, not per forward call).
# --------------------------------------------------------------------------- #
def init_params(key, latent_features):
    """Deterministic init matching ActionHeadNormal.__init__ shapes
    (PyTorch nn.Linear default: U(-1/sqrt(fan_in), 1/sqrt(fan_in)))."""
    dims = [(latent_features, 128), (128, 64), (64, _ACTION_DIM)]
    params = []
    for fan_in, fan_out in dims:
        key, kw, kb = jax.random.split(key, 3)
        bound = 1.0 / np.sqrt(fan_in)
        w = jax.random.uniform(kw, (fan_in, fan_out), jnp.float32, -bound, bound)
        b = jax.random.uniform(kb, (fan_out,), jnp.float32, -bound, bound)
        params.extend([w, b])
    log_std = jnp.zeros((_ACTION_DIM,), jnp.float32)
    params.append(log_std)
    return tuple(params)


def prepare_params(params):
    """Hoist all padding / reshaping / dtype casts out of the forward path."""
    w1, b1, w2, b2, w3, b3, log_std = params
    h2, a = w3.shape
    assert a == _ACTION_DIM
    w3_p = jnp.zeros((h2, _A_PAD), jnp.float32).at[:, :a].set(w3)
    b3_p = jnp.zeros((1, _A_PAD), jnp.float32).at[0, :a].set(b3)
    return {
        "w1": w1.astype(jnp.bfloat16),
        "b1": b1.reshape(1, -1).astype(jnp.float32),
        "w2": w2.astype(jnp.bfloat16),
        "b2": b2.reshape(1, -1).astype(jnp.float32),
        "w3": w3_p.astype(jnp.bfloat16),
        "b3": b3_p,
        # std depends only on parameters -> computed once here, not per step.
        # Re-run prepare_params() after any log_std update during training.
        "std": jnp.exp(log_std),
    }


# --------------------------------------------------------------------------- #
# Tiling / VMEM budgeting.
# --------------------------------------------------------------------------- #
def _round_up(x, m):
    return ((x + m - 1) // m) * m


def _weight_vmem_bytes(F, H1, H2):
    """Single-copy VMEM footprint of the resident weights/biases (tile-padded)."""
    lanes = lambda n: _round_up(n, 128)
    subl = lambda n: _round_up(n, 8)
    return (subl(F) * lanes(H1) * 2 + subl(1) * lanes(H1) * 4
            + subl(H1) * lanes(H2) * 2 + subl(1) * lanes(H2) * 4
            + subl(H2) * lanes(_A_PAD) * 2 + subl(1) * lanes(_A_PAD) * 4)


def _choose_tiling(B, F, x_itemsize, block_b):
    """Pick (batch_tile, num_blocks).

    - tile rounded to 16 sublanes (bf16-friendly),
    - capped so 2 x-buffers + 2 out-buffers + 2 weight copies fit the VMEM budget,
    - >= 2 (even) grid steps whenever B is large enough, so the "parallel" batch
      axis shards across both v7x TensorCores.
    """
    lanes = lambda n: _round_up(n, 128)
    x_row = lanes(F) * x_itemsize
    out_row = lanes(_ACTION_DIM) * 4
    w_bytes = 2 * _weight_vmem_bytes(F, 128, 64)   # conservative: double-buffered weights
    budget_rows = max(16, (_VMEM_BUDGET_BYTES - w_bytes) // (2 * (x_row + out_row)))
    tb_cap = max(16, min(_round_up(block_b, 16), (budget_rows // 16) * 16))

    if B <= 16:
        tb = _round_up(max(B, 1), 16)
        return tb, pl.cdiv(B, tb)

    nb = max(2, pl.cdiv(B, tb_cap))
    if nb % 2:
        nb += 1                                    # even step count -> balanced 2-TC split
    tb = min(tb_cap, _round_up(pl.cdiv(B, nb), 16))
    return tb, pl.cdiv(B, tb)


# --------------------------------------------------------------------------- #
# Forward wrappers.
# --------------------------------------------------------------------------- #
def _xla_forward(latents, p):
    """Plain-XLA path for tiny batches (kernel launch would dominate)."""
    x = latents.astype(jnp.bfloat16)
    h1 = jnp.maximum(
        jnp.dot(x, p["w1"], preferred_element_type=jnp.float32) + p["b1"], 0.0)
    h2 = jnp.maximum(
        jnp.dot(h1.astype(jnp.bfloat16), p["w2"],
                preferred_element_type=jnp.float32) + p["b2"], 0.0)
    mean = (jnp.dot(h2.astype(jnp.bfloat16), p["w3"],
                    preferred_element_type=jnp.float32) + p["b3"])
    return mean[:, :_ACTION_DIM], p["std"]


def _pallas_forward(latents, p, tb, num_blocks, single_buffer_weights):
    B, F = latents.shape
    H1 = p["w1"].shape[1]
    H2 = p["w2"].shape[1]

    # Constant index_map -> weights stay VMEM-resident; single-buffer them when
    # the build supports it (the second pipeline buffer would be wasted VMEM).
    wkw = {"pipeline_mode": pl.Buffered(1)} if single_buffer_weights else {}

    def const2d(shape):
        return pl.BlockSpec(shape, lambda i: (0, 0), **wkw)

    return pl.pallas_call(
        _action_head_kernel,
        grid=(num_blocks,),
        in_specs=[
            # x tile: streamed & double-buffered.  (On v7x, if profiling shows
            # exposed DMA, sweep pipeline_mode=pl.Buffered(3) on this spec only.)
            pl.BlockSpec((tb, F), lambda i: (i, 0)),
            const2d((F, H1)), const2d((1, H1)),          # layer 1 (VMEM-resident)
            const2d((H1, H2)), const2d((1, H2)),         # layer 2
            const2d((H2, _A_PAD)), const2d((1, _A_PAD)), # layer 3
        ],
        out_specs=pl.BlockSpec((tb, _ACTION_DIM), lambda i: (i, 0)),
        out_shape=jax.ShapeDtypeStruct((B, _ACTION_DIM), jnp.float32),
        compiler_params=pltpu.CompilerParams(
            dimension_semantics=("parallel",),           # shard batch over v7x's 2 TCs
            vmem_limit_bytes=_VMEM_BUDGET_BYTES,         # explicit; > v5e's 16 MiB scoped default
        ),
    )(latents, p["w1"], p["b1"], p["w2"], p["b2"], p["w3"], p["b3"])


def action_head_normal_forward(latents, prepared, *,
                               block_b=_DEFAULT_BLOCK_B, force_pallas=False):
    """Returns (mean, std) of the Normal policy distribution.

    `latents` is consumed as-is (no wrapper-side cast): pass bf16 from the
    producer to halve HBM read traffic; the kernel casts to bf16 internally.
    """
    global _single_buffer_weights_ok
    assert latents.ndim == 2, "latents must be (batch, latent_features)"
    B, F = latents.shape
    p = prepared

    if not force_pallas and B < _XLA_FALLBACK_MAX_B:
        return _xla_forward(latents, p)

    tb, num_blocks = _choose_tiling(B, F, latents.dtype.itemsize, block_b)

    if _single_buffer_weights_ok:
        try:
            mean = _pallas_forward(latents, p, tb, num_blocks,
                                   single_buffer_weights=True)
            return mean, p["std"]
        except Exception:
            # This JAX build rejects single-buffered constant specs; fall back
            # (costs only a tiny duplicate weight copy in VMEM).
            _single_buffer_weights_ok = False
    mean = _pallas_forward(latents, p, tb, num_blocks, single_buffer_weights=False)
    return mean, p["std"]


# --------------------------------------------------------------------------- #
# References for verification.
# --------------------------------------------------------------------------- #
def _reference_forward(latents, params):
    """Full-f32 reference (matches the PyTorch module exactly)."""
    w1, b1, w2, b2, w3, b3, log_std = params
    x = latents.astype(jnp.float32)
    h1 = jnp.maximum(x @ w1 + b1, 0.0)
    h2 = jnp.maximum(h1 @ w2 + b2, 0.0)
    mean = h2 @ w3 + b3
    std = jnp.exp(log_std)
    return mean, std


def _reference_forward_quantized(latents, p):
    """Reference using the same bf16 weights / f32 accumulation as the kernel."""
    x = latents.astype(jnp.bfloat16)
    h1 = jnp.maximum(
        jnp.dot(x, p["w1"], preferred_element_type=jnp.float32) + p["b1"], 0.0)
    h2 = jnp.maximum(
        jnp.dot(h1.astype(jnp.bfloat16), p["w2"],
                preferred_element_type=jnp.float32) + p["b2"], 0.0)
    mean = (jnp.dot(h2.astype(jnp.bfloat16), p["w3"],
                    preferred_element_type=jnp.float32) + p["b3"])
    return mean[:, :_ACTION_DIM], p["std"]


if __name__ == "__main__":
    key = jax.random.PRNGKey(0)
    latent_features = 32
    batch = 2

    key, k_lat, k_par, k_big = jax.random.split(key, 4)
    latents = jax.random.normal(k_lat, (batch, latent_features), jnp.float32)
    params = init_params(k_par, latent_features)
    prepared = prepare_params(params)
    ref_std = _reference_forward(latents, params)[1]

    # --- small batch (force the Pallas path; single grid step, tb=16) -------
    mean, std = action_head_normal_forward(latents, prepared, force_pallas=True)
    mean = jax.block_until_ready(mean)
    std = jax.block_until_ready(std)

    ref_mean, _ = _reference_forward(latents, params)
    q_mean, _ = _reference_forward_quantized(latents, prepared)
    np.testing.assert_allclose(np.asarray(mean), np.asarray(q_mean),
                               rtol=1e-3, atol=1e-3)          # same bf16 path
    np.testing.assert_allclose(np.asarray(mean), np.asarray(ref_mean),
                               rtol=5e-2, atol=5e-2)          # vs f32 module
    np.testing.assert_allclose(np.asarray(std), np.asarray(ref_std),
                               rtol=1e-6, atol=1e-6)
    assert mean.shape == (batch, _ACTION_DIM)
    assert std.shape == (_ACTION_DIM,)

    # --- larger batch: 2 even grid steps (2-TC sharding) + partial last block
    big = jax.random.normal(k_big, (300, latent_features), jnp.float32)
    mean_b, std_b = action_head_normal_forward(big, prepared)
    mean_b = jax.block_until_ready(mean_b)
    ref_b, _ = _reference_forward(big, params)
    qref_b, _ = _reference_forward_quantized(big, prepared)
    np.testing.assert_allclose(np.asarray(mean_b), np.asarray(qref_b),
                               rtol=1e-3, atol=1e-3)
    np.testing.assert_allclose(np.asarray(mean_b), np.asarray(ref_b),
                               rtol=5e-2, atol=5e-2)
    np.testing.assert_allclose(np.asarray(std_b), np.asarray(ref_std),
                               rtol=1e-6, atol=1e-6)
    assert mean_b.shape == (300, _ACTION_DIM)

    # --- bf16 latents straight from a (simulated) producer: half HBM traffic.
    big_bf16 = big.astype(jnp.bfloat16)
    mean_h, std_h = action_head_normal_forward(big_bf16, prepared)
    mean_h = jax.block_until_ready(mean_h)
    qref_h, _ = _reference_forward_quantized(big_bf16, prepared)
    np.testing.assert_allclose(np.asarray(mean_h), np.asarray(qref_h),
                               rtol=1e-3, atol=1e-3)
    np.testing.assert_allclose(np.asarray(std_h), np.asarray(ref_std),
                               rtol=1e-6, atol=1e-6)
    assert mean_h.shape == (300, _ACTION_DIM)

    print("KERNEL_OK")
</pallas_src>

<mosaic_0001>
module attributes {stable_mosaic.version = 11 : i64} {
  func.func @_action_head_kernel(%arg0: i32, %arg1: memref<16x32xf32, #tpu.memory_space<vmem>>, %arg2: memref<32x128xbf16, #tpu.memory_space<vmem>>, %arg3: memref<1x128xf32, #tpu.memory_space<vmem>>, %arg4: memref<128x64xbf16, #tpu.memory_space<vmem>>, %arg5: memref<1x64xf32, #tpu.memory_space<vmem>>, %arg6: memref<64x8xbf16, #tpu.memory_space<vmem>>, %arg7: memref<1x8xf32, #tpu.memory_space<vmem>>, %arg8: memref<16x3xf32, #tpu.memory_space<vmem>>) attributes {dimension_semantics = [#tpu.dimension_semantics<parallel>], iteration_bounds = array<i64: 1>, scalar_prefetch = 0 : i64, scratch_operands = 0 : i64, tpu.core_type = #tpu.core_type<tc>, window_params = [{transform_indices = @transform_0, window_bounds = array<i64: 16, 32>}, {pipeline_mode = #tpu.pipeline_mode<synchronous>, transform_indices = @transform_1, window_bounds = array<i64: 32, 128>}, {pipeline_mode = #tpu.pipeline_mode<synchronous>, transform_indices = @transform_2, window_bounds = array<i64: 1, 128>}, {pipeline_mode = #tpu.pipeline_mode<synchronous>, transform_indices = @transform_3, window_bounds = array<i64: 128, 64>}, {pipeline_mode = #tpu.pipeline_mode<synchronous>, transform_indices = @transform_4, window_bounds = array<i64: 1, 64>}, {pipeline_mode = #tpu.pipeline_mode<synchronous>, transform_indices = @transform_5, window_bounds = array<i64: 64, 8>}, {pipeline_mode = #tpu.pipeline_mode<synchronous>, transform_indices = @transform_6, window_bounds = array<i64: 1, 8>}, {transform_indices = @transform_7, window_bounds = array<i64: 16, 3>}]} {
    %c0 = arith.constant 0 : index
    %c0_0 = arith.constant 0 : index
    %0 = vector.load %arg1[%c0, %c0_0] : memref<16x32xf32, #tpu.memory_space<vmem>>, vector<16x32xf32>
    %1 = arith.truncf %0 : vector<16x32xf32> to vector<16x32xbf16>
    %c0_1 = arith.constant 0 : index
    %c0_2 = arith.constant 0 : index
    %2 = vector.load %arg2[%c0_1, %c0_2] : memref<32x128xbf16, #tpu.memory_space<vmem>>, vector<32x128xbf16>
    %cst = arith.constant dense<0.000000e+00> : vector<16x128xf32>
    %3 = tpu.matmul %1, %2, %cst {dimension_numbers = #tpu.dot_dimension_numbers<[1], [0], [0], [1], [0, 0, 1, 1], [], []>} : vector<16x32xbf16>, vector<32x128xbf16>, vector<16x128xf32> -> vector<16x128xf32>
    %c0_3 = arith.constant 0 : index
    %c0_4 = arith.constant 0 : index
    %4 = vector.load %arg3[%c0_3, %c0_4] : memref<1x128xf32, #tpu.memory_space<vmem>>, vector<1x128xf32>
    %5 = vector.broadcast %4 : vector<1x128xf32> to vector<16x128xf32>
    %6 = arith.addf %3, %5 : vector<16x128xf32>
    %cst_5 = arith.constant 0.000000e+00 : f32
    %7 = vector.broadcast %cst_5 : f32 to vector<16x128xf32>
    %8 = arith.maximumf %6, %7 : vector<16x128xf32>
    %9 = arith.truncf %8 : vector<16x128xf32> to vector<16x128xbf16>
    %c0_6 = arith.constant 0 : index
    %c0_7 = arith.constant 0 : index
    %10 = vector.load %arg4[%c0_6, %c0_7] : memref<128x64xbf16, #tpu.memory_space<vmem>>, vector<128x64xbf16>
    %cst_8 = arith.constant dense<0.000000e+00> : vector<16x64xf32>
    %11 = tpu.matmul %9, %10, %cst_8 {dimension_numbers = #tpu.dot_dimension_numbers<[1], [0], [0], [1], [0, 0, 1, 1], [], []>} : vector<16x128xbf16>, vector<128x64xbf16>, vector<16x64xf32> -> vector<16x64xf32>
    %c0_9 = arith.constant 0 : index
    %c0_10 = arith.constant 0 : index
    %12 = vector.load %arg5[%c0_9, %c0_10] : memref<1x64xf32, #tpu.memory_space<vmem>>, vector<1x64xf32>
    %13 = vector.broadcast %12 : vector<1x64xf32> to vector<16x64xf32>
    %14 = arith.addf %11, %13 : vector<16x64xf32>
    %cst_11 = arith.constant 0.000000e+00 : f32
    %15 = vector.broadcast %cst_11 : f32 to vector<16x64xf32>
    %16 = arith.maximumf %14, %15 : vector<16x64xf32>
    %17 = arith.truncf %16 : vector<16x64xf32> to vector<16x64xbf16>
    %c0_12 = arith.constant 0 : index
    %c0_13 = arith.constant 0 : index
    %18 = vector.load %arg6[%c0_12, %c0_13] : memref<64x8xbf16, #tpu.memory_space<vmem>>, vector<64x8xbf16>
    %cst_14 = arith.constant dense<0.000000e+00> : vector<16x8xf32>
    %19 = tpu.matmul %17, %18, %cst_14 {dimension_numbers = #tpu.dot_dimension_numbers<[1], [0], [0], [1], [0, 0, 1, 1], [], []>} : vector<16x64xbf16>, vector<64x8xbf16>, vector<16x8xf32> -> vector<16x8xf32>
    %c0_15 = arith.constant 0 : index
    %c0_16 = arith.constant 0 : index
    %20 = vector.load %arg7[%c0_15, %c0_16] : memref<1x8xf32, #tpu.memory_space<vmem>>, vector<1x8xf32>
    %21 = vector.broadcast %20 : vector<1x8xf32> to vector<16x8xf32>
    %22 = arith.addf %19, %21 : vector<16x8xf32>
    %23 = vector.extract_strided_slice %22 {offsets = [0, 0], sizes = [16, 3], strides = [1, 1]} : vector<16x8xf32> to vector<16x3xf32>
    %c0_17 = arith.constant 0 : index
    %c0_18 = arith.constant 0 : index
    %24 = vector.load %arg8[%c0_17, %c0_18] : memref<16x3xf32, #tpu.memory_space<vmem>>, vector<16x3xf32>
    tpu.vector_store %arg8[%c0_17, %c0_18], %23 {strides = array<i32>} : memref<16x3xf32, #tpu.memory_space<vmem>>, vector<16x3xf32>,
    return
  }
  func.func @transform_0(%arg0: i32) -> (i32, i32) {
    %c0_i32 = arith.constant 0 : i32
    %c0_i32_0 = arith.constant 0 : i32
    return %arg0, %c0_i32 : i32, i32
  }
  func.func @transform_1(%arg0: i32) -> (i32, i32) {
    %c0_i32 = arith.constant 0 : i32
    %c0_i32_0 = arith.constant 0 : i32
    %c0_i32_1 = arith.constant 0 : i32
    return %c0_i32, %c0_i32_0 : i32, i32
  }
  func.func @transform_2(%arg0: i32) -> (i32, i32) {
    %c0_i32 = arith.constant 0 : i32
    %c0_i32_0 = arith.constant 0 : i32
    %c0_i32_1 = arith.constant 0 : i32
    return %c0_i32, %c0_i32_0 : i32, i32
  }
  func.func @transform_3(%arg0: i32) -> (i32, i32) {
    %c0_i32 = arith.constant 0 : i32
    %c0_i32_0 = arith.constant 0 : i32
    %c0_i32_1 = arith.constant 0 : i32
    return %c0_i32, %c0_i32_0 : i32, i32
  }
  func.func @transform_4(%arg0: i32) -> (i32, i32) {
    %c0_i32 = arith.constant 0 : i32
    %c0_i32_0 = arith.constant 0 : i32
    %c0_i32_1 = arith.constant 0 : i32
    return %c0_i32, %c0_i32_0 : i32, i32
  }
  func.func @transform_5(%arg0: i32) -> (i32, i32) {
    %c0_i32 = arith.constant 0 : i32
    %c0_i32_0 = arith.constant 0 : i32
    %c0_i32_1 = arith.constant 0 : i32
    return %c0_i32, %c0_i32_0 : i32, i32
  }
  func.func @transform_6(%arg0: i32) -> (i32, i32) {
    %c0_i32 = arith.constant 0 : i32
    %c0_i32_0 = arith.constant 0 : i32
    %c0_i32_1 = arith.constant 0 : i32
    return %c0_i32, %c0_i32_0 : i32, i32
  }
  func.func @transform_7(%arg0: i32) -> (i32, i32) {
    %c0_i32 = arith.constant 0 : i32
    %c0_i32_0 = arith.constant 0 : i32
    return %arg0, %c0_i32 : i32, i32
  }
}

module attributes {stable_mosaic.version = 11 : i64} {
  func.func @_action_head_kernel(%arg0: i32, %arg1: memref<16x32xf32, #tpu.memory_space<vmem>>, %arg2: memref<32x128xbf16, #tpu.memory_space<vmem>>, %arg3: memref<1x128xf32, #tpu.memory_space<vmem>>, %arg4: memref<128x64xbf16, #tpu.memory_space<vmem>>, %arg5: memref<1x64xf32, #tpu.memory_space<vmem>>, %arg6: memref<64x8xbf16, #tpu.memory_space<vmem>>, %arg7: memref<1x8xf32, #tpu.memory_space<vmem>>, %arg8: memref<16x3xf32, #tpu.memory_space<vmem>>) attributes {dimension_semantics = [#tpu.dimension_semantics<parallel>], iteration_bounds = array<i64: 1>, scalar_prefetch = 0 : i64, scratch_operands = 0 : i64, tpu.core_type = #tpu.core_type<tc>, window_params = [{transform_indices = @transform_0, window_bounds = array<i64: 16, 32>}, {pipeline_mode = #tpu.pipeline_mode<synchronous>, transform_indices = @transform_1, window_bounds = array<i64: 32, 128>}, {pipeline_mode = #tpu.pipeline_mode<synchronous>, transform_indices = @transform_2, window_bounds = array<i64: 1, 128>}, {pipeline_mode = #tpu.pipeline_mode<synchronous>, transform_indices = @transform_3, window_bounds = array<i64: 128, 64>}, {pipeline_mode = #tpu.pipeline_mode<synchronous>, transform_indices = @transform_4, window_bounds = array<i64: 1, 64>}, {pipeline_mode = #tpu.pipeline_mode<synchronous>, transform_indices = @transform_5, window_bounds = array<i64: 64, 8>}, {pipeline_mode = #tpu.pipeline_mode<synchronous>, transform_indices = @transform_6, window_bounds = array<i64: 1, 8>}, {transform_indices = @transform_7, window_bounds = array<i64: 16, 3>}]} {
    %c0 = arith.constant 0 : index
    %c0_0 = arith.constant 0 : index
    %0 = vector.load %arg1[%c0, %c0_0] : memref<16x32xf32, #tpu.memory_space<vmem>>, vector<16x32xf32>
    %1 = arith.truncf %0 : vector<16x32xf32> to vector<16x32xbf16>
    %c0_1 = arith.constant 0 : index
    %c0_2 = arith.constant 0 : index
    %2 = vector.load %arg2[%c0_1, %c0_2] : memref<32x128xbf16, #tpu.memory_space<vmem>>, vector<32x128xbf16>
    %cst = arith.constant dense<0.000000e+00> : vector<16x128xf32>
    %3 = tpu.matmul %1, %2, %cst {dimension_numbers = #tpu.dot_dimension_numbers<[1], [0], [0], [1], [0, 0, 1, 1], [], []>} : vector<16x32xbf16>, vector<32x128xbf16>, vector<16x128xf32> -> vector<16x128xf32>
    %c0_3 = arith.constant 0 : index
    %c0_4 = arith.constant 0 : index
    %4 = vector.load %arg3[%c0_3, %c0_4] : memref<1x128xf32, #tpu.memory_space<vmem>>, vector<1x128xf32>
    %5 = vector.broadcast %4 : vector<1x128xf32> to vector<16x128xf32>
    %6 = arith.addf %3, %5 : vector<16x128xf32>
    %cst_5 = arith.constant 0.000000e+00 : f32
    %7 = vector.broadcast %cst_5 : f32 to vector<16x128xf32>
    %8 = arith.maximumf %6, %7 : vector<16x128xf32>
    %9 = arith.truncf %8 : vector<16x128xf32> to vector<16x128xbf16>
    %c0_6 = arith.constant 0 : index
    %c0_7 = arith.constant 0 : index
    %10 = vector.load %arg4[%c0_6, %c0_7] : memref<128x64xbf16, #tpu.memory_space<vmem>>, vector<128x64xbf16>
    %cst_8 = arith.constant dense<0.000000e+00> : vector<16x64xf32>
    %11 = tpu.matmul %9, %10, %cst_8 {dimension_numbers = #tpu.dot_dimension_numbers<[1], [0], [0], [1], [0, 0, 1, 1], [], []>} : vector<16x128xbf16>, vector<128x64xbf16>, vector<16x64xf32> -> vector<16x64xf32>
    %c0_9 = arith.constant 0 : index
    %c0_10 = arith.constant 0 : index
    %12 = vector.load %arg5[%c0_9, %c0_10] : memref<1x64xf32, #tpu.memory_space<vmem>>, vector<1x64xf32>
    %13 = vector.broadcast %12 : vector<1x64xf32> to vector<16x64xf32>
    %14 = arith.addf %11, %13 : vector<16x64xf32>
    %cst_11 = arith.constant 0.000000e+00 : f32
    %15 = vector.broadcast %cst_11 : f32 to vector<16x64xf32>
    %16 = arith.maximumf %14, %15 : vector<16x64xf32>
    %17 = arith.truncf %16 : vector<16x64xf32> to vector<16x64xbf16>
    %c0_12 = arith.constant 0 : index
    %c0_13 = arith.constant 0 : index
    %18 = vector.load %arg6[%c0_12, %c0_13] : memref<64x8xbf16, #tpu.memory_space<vmem>>, vector<64x8xbf16>
    %cst_14 = arith.constant dense<0.000000e+00> : vector<16x8xf32>
    %19 = tpu.matmul %17, %18, %cst_14 {dimension_numbers = #tpu.dot_dimension_numbers<[1], [0], [0], [1], [0, 0, 1, 1], [], []>} : vector<16x64xbf16>, vector<64x8xbf16>, vector<16x8xf32> -> vector<16x8xf32>
    %c0_15 = arith.constant 0 : index
    %c0_16 = arith.constant 0 : index
    %20 = vector.load %arg7[%c0_15, %c0_16] : memref<1x8xf32, #tpu.memory_space<vmem>>, vector<1x8xf32>
    %21 = vector.broadcast %20 : vector<1x8xf32> to vector<16x8xf32>
    %22 = arith.addf %19, %21 : vector<16x8xf32>
    %23 = vector.extract_strided_slice %22 {offsets = [0, 0], sizes = [16, 3], strides = [1, 1]} : vector<16x8xf32> to vector<16x3xf32>
    %c0_17 = arith.constant 0 : index
    %c0_18 = arith.constant 0 : index
    %24 = vector.load %arg8[%c0_17, %c0_18] : memref<16x3xf32, #tpu.memory_space<vmem>>, vector<16x3xf32>
    tpu.vector_store %arg8[%c0_17, %c0_18], %23 {strides = array<i32>} : memref<16x3xf32, #tpu.memory_space<vmem>>, vector<16x3xf32>,
    return
  }
  func.func @transform_0(%arg0: i32) -> (i32, i32) {
    %c0_i32 = arith.constant 0 : i32
    %c0_i32_0 = arith.constant 0 : i32
    return %arg0, %c0_i32 : i32, i32
  }
  func.func @transform_1(%arg0: i32) -> (i32, i32) {
    %c0_i32 = arith.constant 0 : i32
    %c0_i32_0 = arith.constant 0 : i32
    %c0_i32_1 = arith.constant 0 : i32
    return %c0_i32, %c0_i32_0 : i32, i32
  }
  func.func @transform_2(%arg0: i32) -> (i32, i32) {
    %c0_i32 = arith.constant 0 : i32
    %c0_i32_0 = arith.constant 0 : i32
    %c0_i32_1 = arith.constant 0 : i32
    return %c0_i32, %c0_i32_0 : i32, i32
  }
  func.func @transform_3(%arg0: i32) -> (i32, i32) {
    %c0_i32 = arith.constant 0 : i32
    %c0_i32_0 = arith.constant 0 : i32
    %c0_i32_1 = arith.constant 0 : i32
    return %c0_i32, %c0_i32_0 : i32, i32
  }
  func.func @transform_4(%arg0: i32) -> (i32, i32) {
    %c0_i32 = arith.constant 0 : i32
    %c0_i32_0 = arith.constant 0 : i32
    %c0_i32_1 = arith.constant 0 : i32
    return %c0_i32, %c0_i32_0 : i32, i32
  }
  func.func @transform_5(%arg0: i32) -> (i32, i32) {
    %c0_i32 = arith.constant 0 : i32
    %c0_i32_0 = arith.constant 0 : i32
    %c0_i32_1 = arith.constant 0 : i32
    return %c0_i32, %c0_i32_0 : i32, i32
  }
  func.func @transform_6(%arg0: i32) -> (i32, i32) {
    %c0_i32 = arith.constant 0 : i32
    %c0_i32_0 = arith.constant 0 : i32
    %c0_i32_1 = arith.constant 0 : i32
    return %c0_i32, %c0_i32_0 : i32, i32
  }
  func.func @transform_7(%arg0: i32) -> (i32, i32) {
    %c0_i32 = arith.constant 0 : i32
    %c0_i32_0 = arith.constant 0 : i32
    return %arg0, %c0_i32 : i32, i32
  }
}

</mosaic_0001>

<llo_original>
// kernel: tpu_custom_call.1
$region0: #{tpu_custom_call.1}
  #allocation0 [shape = 'u32[]', space=smem, size = 0x4, offset = 0x4, fixed_abs, tag = 'smem constant byte address 0x4 - core index']
  #allocation1 [shape = 'u32[144,128]{1,0:T(1,128)}', space=vmem, size = 0x12000, scoped, tag = 'internal scratch']
  %s0 = inlined_call_operand.vmem [shape: f32[2,32], index: 0, kind: input, shape index: {}]
  %s1 = inlined_call_operand.vmem [shape: bf16[32,128], index: 1, kind: input, shape index: {}]
  %s2 = inlined_call_operand.vmem [shape: f32[1,128], index: 2, kind: input, shape index: {}]
  %s3 = inlined_call_operand.vmem [shape: bf16[128,64], index: 3, kind: input, shape index: {}]
  %s4 = inlined_call_operand.vmem [shape: f32[1,64], index: 4, kind: input, shape index: {}]
  %s5 = inlined_call_operand.vmem [shape: bf16[64,8], index: 5, kind: input, shape index: {}]
  %s6 = inlined_call_operand.vmem [shape: f32[1,8], index: 6, kind: input, shape index: {}]
  %s7 = inlined_call_operand.hbm [shape: f32[2,3], index: 7, kind: output, shape index: {}]
  %s8 = sld [smem:[#allocation0]]
  $region38: #{tpu_custom_call.1} parent=0
    _
  %s10 = ssub.s32 1, %s8
  %s11 = scalar_select 0, %s10, %s8
  $region1: #{tpu_custom_call.1} parent=0
    #allocation2 [shape = 'u8[8192]{0}', space=vmem, size = 0x2000, scoped, tag = 'output window, operand 0, single buffered']
    #allocation3 [shape = 's32[1]{0}', space=sflag, size = 0x4, scoped, tag = 'scoped memory for tpu_custom_call.1']
    %12 = vsyncpa [#allocation3], 0
    // Predicated region
    $region2: #{tpu_custom_call.1} parent=1 // pred_check
      _
    $region3: #{tpu_custom_call.1} parent=1 // pred_check_branch
      %14 = sbr.rel (0) target = $region5
    $region4: #{tpu_custom_call.1} parent=1 // pred_region
      _
    $region5: #{tpu_custom_call.1} parent=1 // pred_fallthru
      _
    // Predicated region
    $region6: #{tpu_custom_call.1} parent=1 // pred_check
      _
    $region7: #{tpu_custom_call.1} parent=1 // pred_check_branch
      %16 = sbr.rel (0) target = $region9
    $region8: #{tpu_custom_call.1} parent=1 // pred_region
      _
    $region9: #{tpu_custom_call.1} parent=1 // pred_fallthru
      _
    // Predicated region
    $region10: #{tpu_custom_call.1} parent=1 // pred_check
      _
    $region11: #{tpu_custom_call.1} parent=1 // pred_check_branch
      %18 = sbr.rel (0) target = $region13
    $region12: #{tpu_custom_call.1} parent=1 // pred_region
      _
    $region13: #{tpu_custom_call.1} parent=1 // pred_fallthru
      _
    // Predicated region
    $region14: #{tpu_custom_call.1} parent=1 // pred_check
      _
    $region15: #{tpu_custom_call.1} parent=1 // pred_check_branch
      %20 = sbr.rel (0) target = $region17
    $region16: #{tpu_custom_call.1} parent=1 // pred_region
      _
    $region17: #{tpu_custom_call.1} parent=1 // pred_fallthru
      _
    // Predicated region
    $region18: #{tpu_custom_call.1} parent=1 // pred_check
      _
    $region19: #{tpu_custom_call.1} parent=1 // pred_check_branch
      %22 = sbr.rel (0) target = $region21
    $region20: #{tpu_custom_call.1} parent=1 // pred_region
      _
    $region21: #{tpu_custom_call.1} parent=1 // pred_fallthru
      _
    // Predicated region
    $region22: #{tpu_custom_call.1} parent=1 // pred_check
      _
    $region23: #{tpu_custom_call.1} parent=1 // pred_check_branch
      %24 = sbr.rel (0) target = $region25
    $region24: #{tpu_custom_call.1} parent=1 // pred_region
      _
    $region25: #{tpu_custom_call.1} parent=1 // pred_fallthru
      _
    // Predicated region
    $region26: #{tpu_custom_call.1} parent=1 // pred_check
      _
    $region27: #{tpu_custom_call.1} parent=1 // pred_check_branch
      %26 = sbr.rel (0) target = $region29
    $region28: #{tpu_custom_call.1} parent=1 // pred_region
      _
    $region29: #{tpu_custom_call.1} parent=1 // pred_fallthru
      _
    %v28 = vld [vmem:[%s0] sm:$0xff]
    %v29 = vld [vmem:[%s0 + $0x8] sm:$0xff]
    %v30 = vpack.c.bf16 %v29, %v28
    %v31 = vld [vmem:[%s1] sm:$0xf]
    %v32 = vld [vmem:[%s1 + $0x4] sm:$0xf]
    %v33 = vld [vmem:[%s1 + $0x8] sm:$0xf]
    %v34 = vld [vmem:[%s1 + $0xc] sm:$0xf]
    %v35 = vld [vmem:[%s2] sm:$0x1]
    %v37 = vlaneseq
    %v38 = vshrl.u32 %v37, 7
    %v39 = vsub.s32 0, %v38
    %v40 = vrot.slane %v35, %v39
    %v46 = vunpack.c.l.b16 %v31
    %v47 = vunpack.c.l.b16 %v32
    %v48 = vunpack.c.l.b16 %v33
    %v49 = vunpack.c.l.b16 %v34
    %v50 = vpack.c.b16 %v47, %v46
    %v51 = vpack.c.b16 %v49, %v48
    %vm54 = vcmask 261120
    %v56 = vsel %vm54, %v30, 0
    %58 = vmatprep.subr.bf16.mxu0 0
    %59 = vmatpush1.bf16.msra.mxu0 0
    %60 = vmatprep.subr.bf16.mxu0 0
    %61 = vmatpush1.bf16.msra.mxu0 0
    %62 = vmatprep.subr.bf16.mxu0 0
    %63 = vmatpush1.bf16.msra.mxu0 0
    %64 = vmatprep.subr.bf16.mxu0 0
    %65 = vmatpush1.bf16.msra.mxu0 0
    %66 = vmatprep.subr.bf16.mxu0 0
    %67 = vmatpush1.bf16.msra.mxu0 0
    %68 = vmatprep.subr.bf16.mxu0 0
    %69 = vmatpush1.bf16.msra.mxu0 0
    %70 = vmatprep.subr.bf16.mxu0 0
    %71 = vmatpush1.bf16.msra.mxu0 %v51
    %72 = vmatprep.subr.bf16.mxu0 0
    %73 = vmatpush1.bf16.msra.mxu0 %v50
    %74 = vmatprep.subr.bf16.mxu0 0
    %75 = vmatpush2.bf16.msra.mxu0 0
    %76 = vmatprep.subr.bf16.mxu0 0
    %77 = vmatpush2.bf16.msra.mxu0 0
    %78 = vmatprep.subr.bf16.mxu0 0
    %79 = vmatpush2.bf16.msra.mxu0 0
    %80 = vmatprep.subr.bf16.mxu0 0
    %81 = vmatpush2.bf16.msra.mxu0 0
    %82 = vmatprep.subr.bf16.mxu0 0
    %83 = vmatpush2.bf16.msra.mxu0 0
    %84 = vmatprep.subr.bf16.mxu0 0
    %85 = vmatpush2.bf16.msra.mxu0 0
    %86 = vmatprep.subr.bf16.mxu0 0
    %87 = vmatpush2.bf16.msra.mxu0 0
    %88 = vmatprep.subr.bf16.mxu0 0
    %89 = vmatpush2.bf16.msra.mxu0 0
    %90 = vmatprep.mubr.bf16.mxu0 0
    %91 = vmatmul.mubr.bf16.gmra.mxu0 %v56
    %v92 = vpop.f32.mrf.mxu0
    %v93 = vadd.f32 %v40, %v92
    %v94 = vpop.f32.mrf.mxu0
    %v95 = vpop.f32.mrf.mxu0
    %v96 = vadd.f32 %v40, %v95
    %v97 = vpop.f32.mrf.mxu0
    %98 = vdwg.mxu0
    %v99 = vmax.f32 %v93, 0.0
    %v100 = vmax.f32 %v96, 0.0
    %v101 = vpack.c.bf16 %v100, %v99
    %v102 = vld [vmem:[%s3] sm:$0xf]
    %v103 = vld [vmem:[%s3 + $0x4] sm:$0xf]
    %v104 = vld [vmem:[%s3 + $0x8] sm:$0xf]
    %v105 = vld [vmem:[%s3 + $0xc] sm:$0xf]
    %v106 = vld [vmem:[%s3 + $0x10] sm:$0xf]
    %v107 = vld [vmem:[%s3 + $0x14] sm:$0xf]
    %v108 = vld [vmem:[%s3 + $0x18] sm:$0xf]
    %v109 = vld [vmem:[%s3 + $0x1c] sm:$0xf]
    %v110 = vld [vmem:[%s3 + $0x20] sm:$0xf]
    %v111 = vld [vmem:[%s3 + $0x24] sm:$0xf]
    %v112 = vld [vmem:[%s3 + $0x28] sm:$0xf]
    %v113 = vld [vmem:[%s3 + $0x2c] sm:$0xf]
    %v114 = vld [vmem:[%s3 + $0x30] sm:$0xf]
    %v115 = vld [vmem:[%s3 + $0x34] sm:$0xf]
    %v116 = vld [vmem:[%s3 + $0x38] sm:$0xf]
    %v117 = vld [vmem:[%s3 + $0x3c] sm:$0xf]
    %v118 = vld [vmem:[%s4] sm:$0x1]
    %v120 = vlaneseq
    %v121 = vshrl.u32 %v120, 7
    %v122 = vsub.s32 0, %v121
    %v123 = vrot.slane %v118, %v122
    %v141 = vunpack.c.l.b16 %v102
    %v142 = vunpack.c.l.b16 %v103
    %v143 = vunpack.c.l.b16 %v104
    %v144 = vunpack.c.l.b16 %v105
    %v145 = vunpack.c.l.b16 %v106
    %v146 = vunpack.c.l.b16 %v107
    %v147 = vunpack.c.l.b16 %v108
    %v148 = vunpack.c.l.b16 %v109
    %v149 = vunpack.c.l.b16 %v110
    %v150 = vunpack.c.l.b16 %v111
    %v151 = vunpack.c.l.b16 %v112
    %v152 = vunpack.c.l.b16 %v113
    %v153 = vunpack.c.l.b16 %v114
    %v154 = vunpack.c.l.b16 %v115
    %v155 = vunpack.c.l.b16 %v116
    %v156 = vunpack.c.l.b16 %v117
    %v157 = vpack.c.b16 %v142, %v141
    %v158 = vpack.c.b16 %v144, %v143
    %v159 = vpack.c.b16 %v146, %v145
    %v160 = vpack.c.b16 %v148, %v147
    %v161 = vpack.c.b16 %v150, %v149
    %v162 = vpack.c.b16 %v152, %v151
    %v163 = vpack.c.b16 %v154, %v153
    %v164 = vpack.c.b16 %v156, %v155
    %173 = vmatprep.subr.bf16.mxu0 0
    %174 = vmatpush1.bf16.msra.mxu0 %v164
    %175 = vmatprep.subr.bf16.mxu0 0
    %176 = vmatpush1.bf16.msra.mxu0 %v163
    %177 = vmatprep.subr.bf16.mxu0 0
    %178 = vmatpush1.bf16.msra.mxu0 %v162
    %179 = vmatprep.subr.bf16.mxu0 0
    %180 = vmatpush1.bf16.msra.mxu0 %v161
    %181 = vmatprep.subr.bf16.mxu0 0
    %182 = vmatpush1.bf16.msra.mxu0 %v160
    %183 = vmatprep.subr.bf16.mxu0 0
    %184 = vmatpush1.bf16.msra.mxu0 %v159
    %185 = vmatprep.subr.bf16.mxu0 0
    %186 = vmatpush1.bf16.msra.mxu0 %v158
    %187 = vmatprep.subr.bf16.mxu0 0
    %188 = vmatpush1.bf16.msra.mxu0 %v157
    %189 = vmatprep.subr.bf16.mxu0 0
    %190 = vmatpush2.bf16.msra.mxu0 0
    %191 = vmatprep.subr.bf16.mxu0 0
    %192 = vmatpush2.bf16.msra.mxu0 0
    %193 = vmatprep.subr.bf16.mxu0 0
    %194 = vmatpush2.bf16.msra.mxu0 0
    %195 = vmatprep.subr.bf16.mxu0 0
    %196 = vmatpush2.bf16.msra.mxu0 0
    %197 = vmatprep.subr.bf16.mxu0 0
    %198 = vmatpush2.bf16.msra.mxu0 0
    %199 = vmatprep.subr.bf16.mxu0 0
    %200 = vmatpush2.bf16.msra.mxu0 0
    %201 = vmatprep.subr.bf16.mxu0 0
    %202 = vmatpush2.bf16.msra.mxu0 0
    %203 = vmatprep.subr.bf16.mxu0 0
    %204 = vmatpush2.bf16.msra.mxu0 0
    %205 = vmatprep.mubr.bf16.mxu0 0
    %206 = vmatmul.mubr.bf16.gmra.mxu0 %v101
    %v207 = vpop.f32.mrf.mxu0
    %v208 = vadd.f32 %v123, %v207
    %v209 = vpop.f32.mrf.mxu0
    %v210 = vpop.f32.mrf.mxu0
    %v211 = vadd.f32 %v123, %v210
    %v212 = vpop.f32.mrf.mxu0
    %213 = vdwg.mxu0
    %v214 = vmax.f32 %v208, 0.0
    %v215 = vmax.f32 %v211, 0.0
    %v216 = vpack.c.bf16 %v215, %v214
    %v217 = vld [vmem:[%s5] sm:$0xf]
    %v218 = vld [vmem:[%s5 + $0x4] sm:$0xf]
    %v219 = vld [vmem:[%s5 + $0x8] sm:$0xf]
    %v220 = vld [vmem:[%s5 + $0xc] sm:$0xf]
    %v221 = vld [vmem:[%s5 + $0x10] sm:$0xf]
    %v222 = vld [vmem:[%s5 + $0x14] sm:$0xf]
    %v223 = vld [vmem:[%s5 + $0x18] sm:$0xf]
    %v224 = vld [vmem:[%s5 + $0x1c] sm:$0xf]
    %v225 = vld [vmem:[%s6] sm:$0x1]
    %v227 = vlaneseq
    %v228 = vshrl.u32 %v227, 7
    %v229 = vsub.s32 0, %v228
    %v230 = vrot.slane %v225, %v229
    %v240 = vunpack.c.l.b16 %v217
    %v241 = vunpack.c.l.b16 %v218
    %v242 = vunpack.c.l.b16 %v219
    %v243 = vunpack.c.l.b16 %v220
    %v244 = vunpack.c.l.b16 %v221
    %v245 = vunpack.c.l.b16 %v222
    %v246 = vunpack.c.l.b16 %v223
    %v247 = vunpack.c.l.b16 %v224
    %v248 = vpack.c.b16 %v241, %v240
    %v249 = vpack.c.b16 %v243, %v242
    %v250 = vpack.c.b16 %v245, %v244
    %v251 = vpack.c.b16 %v247, %v246
    %vm256 = vcmask 523264
    %v258 = vsel %vm256, %v216, 0
    %260 = vmatprep.subr.bf16.mxu0 0
    %261 = vmatpush1.bf16.msra.mxu0 0
    %262 = vmatprep.subr.bf16.mxu0 0
    %263 = vmatpush1.bf16.msra.mxu0 0
    %264 = vmatprep.subr.bf16.mxu0 0
    %265 = vmatpush1.bf16.msra.mxu0 0
    %266 = vmatprep.subr.bf16.mxu0 0
    %267 = vmatpush1.bf16.msra.mxu0 0
    %268 = vmatprep.subr.bf16.mxu0 0
    %269 = vmatpush1.bf16.msra.mxu0 %v251
    %270 = vmatprep.subr.bf16.mxu0 0
    %271 = vmatpush1.bf16.msra.mxu0 %v250
    %272 = vmatprep.subr.bf16.mxu0 0
    %273 = vmatpush1.bf16.msra.mxu0 %v249
    %274 = vmatprep.subr.bf16.mxu0 0
    %275 = vmatpush1.bf16.msra.mxu0 %v248
    %276 = vmatprep.subr.bf16.mxu0 0
    %277 = vmatpush2.bf16.msra.mxu0 0
    %278 = vmatprep.subr.bf16.mxu0 0
    %279 = vmatpush2.bf16.msra.mxu0 0
    %280 = vmatprep.subr.bf16.mxu0 0
    %281 = vmatpush2.bf16.msra.mxu0 0
    %282 = vmatprep.subr.bf16.mxu0 0
    %283 = vmatpush2.bf16.msra.mxu0 0
    %284 = vmatprep.subr.bf16.mxu0 0
    %285 = vmatpush2.bf16.msra.mxu0 0
    %286 = vmatprep.subr.bf16.mxu0 0
    %287 = vmatpush2.bf16.msra.mxu0 0
    %288 = vmatprep.subr.bf16.mxu0 0
    %289 = vmatpush2.bf16.msra.mxu0 0
    %290 = vmatprep.subr.bf16.mxu0 0
    %291 = vmatpush2.bf16.msra.mxu0 0
    %292 = vmatprep.mubr.bf16.mxu0 0
    %293 = vmatmul.mubr.bf16.gmra.mxu0 %v258
    %v294 = vpop.f32.mrf.mxu0
    %v295 = vadd.f32 %v230, %v294
    %v296 = vpop.f32.mrf.mxu0
    %v297 = vpop.f32.mrf.mxu0
    %v298 = vadd.f32 %v230, %v297
    %v299 = vpop.f32.mrf.mxu0
    %300 = vdwg.mxu0
    %vm301 = vcmask 23552
    %302 = vst.msk [vmem:[#allocation2] sm:$0xff] %vm301, %v295
    %303 = vst.msk [vmem:[#allocation2 + $0x8] sm:$0xff] %vm301, %v298
    // Predicated region
    $region30: #{tpu_custom_call.1} parent=1 // pred_check
      _
    $region31: #{tpu_custom_call.1} parent=1 // pred_check_branch
      %305 = sbr.rel (0) target = $region33
    $region32: #{tpu_custom_call.1} parent=1 // pred_region
      %s307 = ssub.s32 256, 32
      %308 = vsyncadd [#allocation3], %s307
      %s309 = sshll.u32 [#allocation2], 4
      %s310 = int_to_ptr.vmem [resolvable:$true] %s309
      %315 = dma.vmem_to_hbm [thread:$0]  %s310, 32, %s7, [#allocation3], 32, 32, 2
    $region33: #{tpu_custom_call.1} parent=1 // pred_fallthru
      _
    // Predicated region
    $region34: #{tpu_custom_call.1} parent=1 // pred_check
      _
    $region35: #{tpu_custom_call.1} parent=1 // pred_check_branch
      %317 = sbr.rel (0) target = $region37
    $region36: #{tpu_custom_call.1} parent=1 // pred_region
      %318 = dma.done [#allocation3], 256
    $region37: #{tpu_custom_call.1} parent=1 // pred_fallthru
      _
    %319 = vsyncpa [#allocation3], 1

// kernel: tpu_custom_call.1
$region0: #{tpu_custom_call.1}
  #allocation0 [shape = 'u32[]', space=smem, size = 0x4, offset = 0x4, fixed_abs, tag = 'smem constant byte address 0x4 - core index']
  #allocation1 [shape = 'u32[144,128]{1,0:T(1,128)}', space=vmem, size = 0x12000, scoped, tag = 'internal scratch']
  %s0 = inlined_call_operand.vmem [shape: f32[2,32], index: 0, kind: input, shape index: {}]
  %s1 = inlined_call_operand.vmem [shape: bf16[32,128], index: 1, kind: input, shape index: {}]
  %s2 = inlined_call_operand.vmem [shape: f32[1,128], index: 2, kind: input, shape index: {}]
  %s3 = inlined_call_operand.vmem [shape: bf16[128,64], index: 3, kind: input, shape index: {}]
  %s4 = inlined_call_operand.vmem [shape: f32[1,64], index: 4, kind: input, shape index: {}]
  %s5 = inlined_call_operand.vmem [shape: bf16[64,8], index: 5, kind: input, shape index: {}]
  %s6 = inlined_call_operand.vmem [shape: f32[1,8], index: 6, kind: input, shape index: {}]
  %s7 = inlined_call_operand.hbm [shape: f32[2,3], index: 7, kind: output, shape index: {}]
  %s8 = sld [smem:[#allocation0]]
  $region38: #{tpu_custom_call.1} parent=0
    _
  %s10 = ssub.s32 1, %s8
  %s11 = scalar_select 0, %s10, %s8
  $region1: #{tpu_custom_call.1} parent=0
    #allocation2 [shape = 'u8[8192]{0}', space=vmem, size = 0x2000, scoped, tag = 'output window, operand 0, single buffered']
    #allocation3 [shape = 's32[1]{0}', space=sflag, size = 0x4, scoped, tag = 'scoped memory for tpu_custom_call.1']
    %12 = vsyncpa [#allocation3], 0
    // Predicated region
    $region2: #{tpu_custom_call.1} parent=1 // pred_check
      _
    $region3: #{tpu_custom_call.1} parent=1 // pred_check_branch
      %14 = sbr.rel (0) target = $region5
    $region4: #{tpu_custom_call.1} parent=1 // pred_region
      _
    $region5: #{tpu_custom_call.1} parent=1 // pred_fallthru
      _
    // Predicated region
    $region6: #{tpu_custom_call.1} parent=1 // pred_check
      _
    $region7: #{tpu_custom_call.1} parent=1 // pred_check_branch
      %16 = sbr.rel (0) target = $region9
    $region8: #{tpu_custom_call.1} parent=1 // pred_region
      _
    $region9: #{tpu_custom_call.1} parent=1 // pred_fallthru
      _
    // Predicated region
    $region10: #{tpu_custom_call.1} parent=1 // pred_check
      _
    $region11: #{tpu_custom_call.1} parent=1 // pred_check_branch
      %18 = sbr.rel (0) target = $region13
    $region12: #{tpu_custom_call.1} parent=1 // pred_region
      _
    $region13: #{tpu_custom_call.1} parent=1 // pred_fallthru
      _
    // Predicated region
    $region14: #{tpu_custom_call.1} parent=1 // pred_check
      _
    $region15: #{tpu_custom_call.1} parent=1 // pred_check_branch
      %20 = sbr.rel (0) target = $region17
    $region16: #{tpu_custom_call.1} parent=1 // pred_region
      _
    $region17: #{tpu_custom_call.1} parent=1 // pred_fallthru
      _
    // Predicated region
    $region18: #{tpu_custom_call.1} parent=1 // pred_check
      _
    $region19: #{tpu_custom_call.1} parent=1 // pred_check_branch
      %22 = sbr.rel (0) target = $region21
    $region20: #{tpu_custom_call.1} parent=1 // pred_region
      _
    $region21: #{tpu_custom_call.1} parent=1 // pred_fallthru
      _
    // Predicated region
    $region22: #{tpu_custom_call.1} parent=1 // pred_check
      _
    $region23: #{tpu_custom_call.1} parent=1 // pred_check_branch
      %24 = sbr.rel (0) target = $region25
    $region24: #{tpu_custom_call.1} parent=1 // pred_region
      _
    $region25: #{tpu_custom_call.1} parent=1 // pred_fallthru
      _
    // Predicated region
    $region26: #{tpu_custom_call.1} parent=1 // pred_check
      _
    $region27: #{tpu_custom_call.1} parent=1 // pred_check_branch
      %26 = sbr.rel (0) target = $region29
    $region28: #{tpu_custom_call.1} parent=1 // pred_region
      _
    $region29: #{tpu_custom_call.1} parent=1 // pred_fallthru
      _
    %v28 = vld [vmem:[%s0] sm:$0xff]
    %v29 = vld [vmem:[%s0 + $0x8] sm:$0xff]
    %v30 = vpack.c.bf16 %v29, %v28
    %v31 = vld [vmem:[%s1] sm:$0xf]
    %v32 = vld [vmem:[%s1 + $0x4] sm:$0xf]
    %v33 = vld [vmem:[%s1 + $0x8] sm:$0xf]
    %v34 = vld [vmem:[%s1 + $0xc] sm:$0xf]
    %v35 = vld [vmem:[%s2] sm:$0x1]
    %v37 = vlaneseq
    %v38 = vshrl.u32 %v37, 7
    %v39 = vsub.s32 0, %v38
    %v40 = vrot.slane %v35, %v39
    %v46 = vunpack.c.l.b16 %v31
    %v47 = vunpack.c.l.b16 %v32
    %v48 = vunpack.c.l.b16 %v33
    %v49 = vunpack.c.l.b16 %v34
    %v50 = vpack.c.b16 %v47, %v46
    %v51 = vpack.c.b16 %v49, %v48
    %vm54 = vcmask 261120
    %v56 = vsel %vm54, %v30, 0
    %58 = vmatprep.subr.bf16.mxu0 0
    %59 = vmatpush1.bf16.msra.mxu0 0
    %60 = vmatprep.subr.bf16.mxu0 0
    %61 = vmatpush1.bf16.msra.mxu0 0
    %62 = vmatprep.subr.bf16.mxu0 0
    %63 = vmatpush1.bf16.msra.mxu0 0
    %64 = vmatprep.subr.bf16.mxu0 0
    %65 = vmatpush1.bf16.msra.mxu0 0
    %66 = vmatprep.subr.bf16.mxu0 0
    %67 = vmatpush1.bf16.msra.mxu0 0
    %68 = vmatprep.subr.bf16.mxu0 0
    %69 = vmatpush1.bf16.msra.mxu0 0
    %70 = vmatprep.subr.bf16.mxu0 0
    %71 = vmatpush1.bf16.msra.mxu0 %v51
    %72 = vmatprep.subr.bf16.mxu0 0
    %73 = vmatpush1.bf16.msra.mxu0 %v50
    %74 = vmatprep.subr.bf16.mxu0 0
    %75 = vmatpush2.bf16.msra.mxu0 0
    %76 = vmatprep.subr.bf16.mxu0 0
    %77 = vmatpush2.bf16.msra.mxu0 0
    %78 = vmatprep.subr.bf16.mxu0 0
    %79 = vmatpush2.bf16.msra.mxu0 0
    %80 = vmatprep.subr.bf16.mxu0 0
    %81 = vmatpush2.bf16.msra.mxu0 0
    %82 = vmatprep.subr.bf16.mxu0 0
    %83 = vmatpush2.bf16.msra.mxu0 0
    %84 = vmatprep.subr.bf16.mxu0 0
    %85 = vmatpush2.bf16.msra.mxu0 0
    %86 = vmatprep.subr.bf16.mxu0 0
    %87 = vmatpush2.bf16.msra.mxu0 0
    %88 = vmatprep.subr.bf16.mxu0 0
    %89 = vmatpush2.bf16.msra.mxu0 0
    %90 = vmatprep.mubr.bf16.mxu0 0
    %91 = vmatmul.mubr.bf16.gmra.mxu0 %v56
    %v92 = vpop.f32.mrf.mxu0
    %v93 = vadd.f32 %v40, %v92
    %v94 = vpop.f32.mrf.mxu0
    %v95 = vpop.f32.mrf.mxu0
    %v96 = vadd.f32 %v40, %v95
    %v97 = vpop.f32.mrf.mxu0
    %98 = vdwg.mxu0
    %v99 = vmax.f32 %v93, 0.0
    %v100 = vmax.f32 %v96, 0.0
    %v101 = vpack.c.bf16 %v100, %v99
    %v102 = vld [vmem:[%s3] sm:$0xf]
    %v103 = vld [vmem:[%s3 + $0x4] sm:$0xf]
    %v104 = vld [vmem:[%s3 + $0x8] sm:$0xf]
    %v105 = vld [vmem:[%s3 + $0xc] sm:$0xf]
    %v106 = vld [vmem:[%s3 + $0x10] sm:$0xf]
    %v107 = vld [vmem:[%s3 + $0x14] sm:$0xf]
    %v108 = vld [vmem:[%s3 + $0x18] sm:$0xf]
    %v109 = vld [vmem:[%s3 + $0x1c] sm:$0xf]
    %v110 = vld [vmem:[%s3 + $0x20] sm:$0xf]
    %v111 = vld [vmem:[%s3 + $0x24] sm:$0xf]
    %v112 = vld [vmem:[%s3 + $0x28] sm:$0xf]
    %v113 = vld [vmem:[%s3 + $0x2c] sm:$0xf]
    %v114 = vld [vmem:[%s3 + $0x30] sm:$0xf]
    %v115 = vld [vmem:[%s3 + $0x34] sm:$0xf]
    %v116 = vld [vmem:[%s3 + $0x38] sm:$0xf]
    %v117 = vld [vmem:[%s3 + $0x3c] sm:$0xf]
    %v118 = vld [vmem:[%s4] sm:$0x1]
    %v120 = vlaneseq
    %v121 = vshrl.u32 %v120, 7
    %v122 = vsub.s32 0, %v121
    %v123 = vrot.slane %v118, %v122
    %v141 = vunpack.c.l.b16 %v102
    %v142 = vunpack.c.l.b16 %v103
    %v143 = vunpack.c.l.b16 %v104
    %v144 = vunpack.c.l.b16 %v105
    %v145 = vunpack.c.l.b16 %v106
    %v146 = vunpack.c.l.b16 %v107
    %v147 = vunpack.c.l.b16 %v108
    %v148 = vunpack.c.l.b16 %v109
    %v149 = vunpack.c.l.b16 %v110
    %v150 = vunpack.c.l.b16 %v111
    %v151 = vunpack.c.l.b16 %v112
    %v152 = vunpack.c.l.b16 %v113
    %v153 = vunpack.c.l.b16 %v114
    %v154 = vunpack.c.l.b16 %v115
    %v155 = vunpack.c.l.b16 %v116
    %v156 = vunpack.c.l.b16 %v117
    %v157 = vpack.c.b16 %v142, %v141
    %v158 = vpack.c.b16 %v144, %v143
    %v159 = vpack.c.b16 %v146, %v145
    %v160 = vpack.c.b16 %v148, %v147
    %v161 = vpack.c.b16 %v150, %v149
    %v162 = vpack.c.b16 %v152, %v151
    %v163 = vpack.c.b16 %v154, %v153
    %v164 = vpack.c.b16 %v156, %v155
    %173 = vmatprep.subr.bf16.mxu0 0
    %174 = vmatpush1.bf16.msra.mxu0 %v164
    %175 = vmatprep.subr.bf16.mxu0 0
    %176 = vmatpush1.bf16.msra.mxu0 %v163
    %177 = vmatprep.subr.bf16.mxu0 0
    %178 = vmatpush1.bf16.msra.mxu0 %v162
    %179 = vmatprep.subr.bf16.mxu0 0
    %180 = vmatpush1.bf16.msra.mxu0 %v161
    %181 = vmatprep.subr.bf16.mxu0 0
    %182 = vmatpush1.bf16.msra.mxu0 %v160
    %183 = vmatprep.subr.bf16.mxu0 0
    %184 = vmatpush1.bf16.msra.mxu0 %v159
    %185 = vmatprep.subr.bf16.mxu0 0
    %186 = vmatpush1.bf16.msra.mxu0 %v158
    %187 = vmatprep.subr.bf16.mxu0 0
    %188 = vmatpush1.bf16.msra.mxu0 %v157
    %189 = vmatprep.subr.bf16.mxu0 0
    %190 = vmatpush2.bf16.msra.mxu0 0
    %191 = vmatprep.subr.bf16.mxu0 0
    %192 = vmatpush2.bf16.msra.mxu0 0
    %193 = vmatprep.subr.bf16.mxu0 0
    %194 = vmatpush2.bf16.msra.mxu0 0
    %195 = vmatprep.subr.bf16.mxu0 0
    %196 = vmatpush2.bf16.msra.mxu0 0
    %197 = vmatprep.subr.bf16.mxu0 0
    %198 = vmatpush2.bf16.msra.mxu0 0
    %199 = vmatprep.subr.bf16.mxu0 0
    %200 = vmatpush2.bf16.msra.mxu0 0
    %201 = vmatprep.subr.bf16.mxu0 0
    %202 = vmatpush2.bf16.msra.mxu0 0
    %203 = vmatprep.subr.bf16.mxu0 0
    %204 = vmatpush2.bf16.msra.mxu0 0
    %205 = vmatprep.mubr.bf16.mxu0 0
    %206 = vmatmul.mubr.bf16.gmra.mxu0 %v101
    %v207 = vpop.f32.mrf.mxu0
    %v208 = vadd.f32 %v123, %v207
    %v209 = vpop.f32.mrf.mxu0
    %v210 = vpop.f32.mrf.mxu0
    %v211 = vadd.f32 %v123, %v210
    %v212 = vpop.f32.mrf.mxu0
    %213 = vdwg.mxu0
    %v214 = vmax.f32 %v208, 0.0
    %v215 = vmax.f32 %v211, 0.0
    %v216 = vpack.c.bf16 %v215, %v214
    %v217 = vld [vmem:[%s5] sm:$0xf]
    %v218 = vld [vmem:[%s5 + $0x4] sm:$0xf]
    %v219 = vld [vmem:[%s5 + $0x8] sm:$0xf]
    %v220 = vld [vmem:[%s5 + $0xc] sm:$0xf]
    %v221 = vld [vmem:[%s5 + $0x10] sm:$0xf]
    %v222 = vld [vmem:[%s5 + $0x14] sm:$0xf]
    %v223 = vld [vmem:[%s5 + $0x18] sm:$0xf]
    %v224 = vld [vmem:[%s5 + $0x1c] sm:$0xf]
    %v225 = vld [vmem:[%s6] sm:$0x1]
    %v227 = vlaneseq
    %v228 = vshrl.u32 %v227, 7
    %v229 = vsub.s32 0, %v228
    %v230 = vrot.slane %v225, %v229
    %v240 = vunpack.c.l.b16 %v217
    %v241 = vunpack.c.l.b16 %v218
    %v242 = vunpack.c.l.b16 %v219
    %v243 = vunpack.c.l.b16 %v220
    %v244 = vunpack.c.l.b16 %v221
    %v245 = vunpack.c.l.b16 %v222
    %v246 = vunpack.c.l.b16 %v223
    %v247 = vunpack.c.l.b16 %v224
    %v248 = vpack.c.b16 %v241, %v240
    %v249 = vpack.c.b16 %v243, %v242
    %v250 = vpack.c.b16 %v245, %v244
    %v251 = vpack.c.b16 %v247, %v246
    %vm256 = vcmask 523264
    %v258 = vsel %vm256, %v216, 0
    %260 = vmatprep.subr.bf16.mxu0 0
    %261 = vmatpush1.bf16.msra.mxu0 0
    %262 = vmatprep.subr.bf16.mxu0 0
    %263 = vmatpush1.bf16.msra.mxu0 0
    %264 = vmatprep.subr.bf16.mxu0 0
    %265 = vmatpush1.bf16.msra.mxu0 0
    %266 = vmatprep.subr.bf16.mxu0 0
    %267 = vmatpush1.bf16.msra.mxu0 0
    %268 = vmatprep.subr.bf16.mxu0 0
    %269 = vmatpush1.bf16.msra.mxu0 %v251
    %270 = vmatprep.subr.bf16.mxu0 0
    %271 = vmatpush1.bf16.msra.mxu0 %v250
    %272 = vmatprep.subr.bf16.mxu0 0
    %273 = vmatpush1.bf16.msra.mxu0 %v249
    %274 = vmatprep.subr.bf16.mxu0 0
    %275 = vmatpush1.bf16.msra.mxu0 %v248
    %276 = vmatprep.subr.bf16.mxu0 0
    %277 = vmatpush2.bf16.msra.mxu0 0
    %278 = vmatprep.subr.bf16.mxu0 0
    %279 = vmatpush2.bf16.msra.mxu0 0
    %280 = vmatprep.subr.bf16.mxu0 0
    %281 = vmatpush2.bf16.msra.mxu0 0
    %282 = vmatprep.subr.bf16.mxu0 0
    %283 = vmatpush2.bf16.msra.mxu0 0
    %284 = vmatprep.subr.bf16.mxu0 0
    %285 = vmatpush2.bf16.msra.mxu0 0
    %286 = vmatprep.subr.bf16.mxu0 0
    %287 = vmatpush2.bf16.msra.mxu0 0
    %288 = vmatprep.subr.bf16.mxu0 0
    %289 = vmatpush2.bf16.msra.mxu0 0
    %290 = vmatprep.subr.bf16.mxu0 0
    %291 = vmatpush2.bf16.msra.mxu0 0
    %292 = vmatprep.mubr.bf16.mxu0 0
    %293 = vmatmul.mubr.bf16.gmra.mxu0 %v258
    %v294 = vpop.f32.mrf.mxu0
    %v295 = vadd.f32 %v230, %v294
    %v296 = vpop.f32.mrf.mxu0
    %v297 = vpop.f32.mrf.mxu0
    %v298 = vadd.f32 %v230, %v297
    %v299 = vpop.f32.mrf.mxu0
    %300 = vdwg.mxu0
    %vm301 = vcmask 23552
    %302 = vst.msk [vmem:[#allocation2] sm:$0xff] %vm301, %v295
    %303 = vst.msk [vmem:[#allocation2 + $0x8] sm:$0xff] %vm301, %v298
    // Predicated region
    $region30: #{tpu_custom_call.1} parent=1 // pred_check
      _
    $region31: #{tpu_custom_call.1} parent=1 // pred_check_branch
      %305 = sbr.rel (0) target = $region33
    $region32: #{tpu_custom_call.1} parent=1 // pred_region
      %s307 = ssub.s32 256, 32
      %308 = vsyncadd [#allocation3], %s307
      %s309 = sshll.u32 [#allocation2], 4
      %s310 = int_to_ptr.vmem [resolvable:$true] %s309
      %315 = dma.vmem_to_hbm [thread:$0]  %s310, 32, %s7, [#allocation3], 32, 32, 2
    $region33: #{tpu_custom_call.1} parent=1 // pred_fallthru
      _
    // Predicated region
    $region34: #{tpu_custom_call.1} parent=1 // pred_check
      _
    $region35: #{tpu_custom_call.1} parent=1 // pred_check_branch
      %317 = sbr.rel (0) target = $region37
    $region36: #{tpu_custom_call.1} parent=1 // pred_region
      %318 = dma.done [#allocation3], 256
    $region37: #{tpu_custom_call.1} parent=1 // pred_fallthru
      _
    %319 = vsyncpa [#allocation3], 1

</llo_original>
